<compile_context>
chip_gen: v5e
topology: v5e:2x2
jax: 0.10.0
libtpu: 0.0.40
codegen_flags: <defaults>
</compile_context>

<pallas_src>
import functools

import jax
import jax.numpy as jnp
from jax.experimental import pallas as pl
from jax.experimental.pallas import tpu as pltpu


def _round_up(x, m):
    return ((x + m - 1) // m) * m


def _encoder_block_kernel(seed_ref, x_ref, w_ref, b_ref, o_ref, *,
                          negative_slope, drop_rate, training,
                          block_m, block_n):
    # Linear: (block_m, K) @ (K, block_n) -> f32 accumulator on the MXU.
    y = jnp.dot(x_ref[...], w_ref[...], preferred_element_type=jnp.float32)
    y = y + b_ref[...]                      # (1, block_n) broadcasts over rows

    # LeakyReLU(negative_slope) in f32 (fast elementwise path on all chips).
    y = jnp.where(y > 0, y, jnp.float32(negative_slope) * y)

    if training and drop_rate > 0.0:
        # Inverted dropout via a counter-based hash PRNG (portable jnp ops,
        # works compiled on TPU and in interpret mode).
        j = pl.program_id(0)                # out_dim tile index
        i = pl.program_id(1)                # batch tile index
        rows = jax.lax.broadcasted_iota(jnp.uint32, y.shape, 0)
        cols = jax.lax.broadcasted_iota(jnp.uint32, y.shape, 1)
        rows = rows + (i * block_m).astype(jnp.uint32)
        cols = cols + (j * block_n).astype(jnp.uint32)
        seed = seed_ref[0].astype(jnp.uint32)
        h = (rows * jnp.uint32(0x9E3779B1)
             + cols * jnp.uint32(0x85EBCA77)
             + seed * jnp.uint32(0xC2B2AE3D))
        h = h ^ (h >> jnp.uint32(16))
        h = h * jnp.uint32(0x7FEB352D)
        h = h ^ (h >> jnp.uint32(15))
        h = h * jnp.uint32(0x846CA68B)
        h = h ^ (h >> jnp.uint32(16))
        # Direct integer threshold: keep with probability (1 - drop_rate).
        threshold = jnp.uint32(min(int(round(drop_rate * (1 << 32))),
                                   (1 << 32) - 1))
        keep = h >= threshold
        y = jnp.where(keep, y * jnp.float32(1.0 / (1.0 - drop_rate)),
                      jnp.float32(0.0))
        # TODO(synk): torch.nn.Dropout uses torch's RNG stream; only the keep
        # probability matches, not the bitwise mask.

    o_ref[...] = y.astype(o_ref.dtype)


def encoder_block(x, w, b, *, negative_slope=0.2, drop_rate=0.0,
                  training=False, seed=0, block_m=256, block_n=512,
                  matmul_dtype=jnp.bfloat16):
    """Forward pass of EncoderBlock.

    x: (B, in_dim) float32
    w: (out_dim, in_dim) float32   (PyTorch nn.Linear weight layout)
    b: (out_dim,) float32
    """
    B, K = x.shape
    N, K2 = w.shape
    assert K == K2

    # Clamp tile sizes so tiny problems don't over-pad; keep (8, 128) alignment.
    block_m = max(8, min(block_m, _round_up(B, 8)))
    block_n = max(128, min(block_n, _round_up(N, 128)))
    B_pad = _round_up(B, block_m)
    N_pad = _round_up(N, block_n)

    # Pad batch / out_dim so tiles are full and the output is lane-dense.
    x_p = jnp.pad(x, ((0, B_pad - B), (0, 0))) if B_pad != B else x
    w_t = jnp.transpose(w)                                  # (K, N)
    w_p = jnp.pad(w_t, ((0, 0), (0, N_pad - N))) if N_pad != N else w_t
    b_p = jnp.pad(b, (0, N_pad - N)) if N_pad != N else b
    b2 = b_p.reshape(1, N_pad).astype(jnp.float32)

    # bf16 matmul operands; accumulation stays f32 via preferred_element_type.
    x_mm = x_p.astype(matmul_dtype)
    w_mm = w_p.astype(matmul_dtype)

    seed_arr = jnp.array([seed], dtype=jnp.int32)

    kernel = functools.partial(
        _encoder_block_kernel,
        negative_slope=negative_slope,
        drop_rate=drop_rate,
        training=training,
        block_m=block_m,
        block_n=block_n,
    )

    # j (out_dim tiles) outer, i (batch tiles) inner: W^T / bias blocks are
    # revisited across the inner loop (no re-DMA).
    grid = (N_pad // block_n, B_pad // block_m)

    out = pl.pallas_call(
        kernel,
        out_shape=jax.ShapeDtypeStruct((B_pad, N_pad), x.dtype),
        grid_spec=pltpu.PrefetchScalarGridSpec(
            num_scalar_prefetch=1,          # seed -> SMEM
            grid=grid,
            in_specs=[
                pl.BlockSpec((block_m, K), lambda j, i, seed: (i, 0)),  # x
                pl.BlockSpec((K, block_n), lambda j, i, seed: (0, j)),  # W^T
                pl.BlockSpec((1, block_n), lambda j, i, seed: (0, j)),  # bias
            ],
            out_specs=pl.BlockSpec((block_m, block_n),
                                   lambda j, i, seed: (i, j)),
        ),
        compiler_params=pltpu.CompilerParams(
            dimension_semantics=("parallel", "parallel"),
        ),
    )(seed_arr, x_mm, w_mm, b2)

    return out[:B, :N]


def encoder_block_ref(x, w, b, negative_slope=0.2):
    """Pure-JAX reference (eval mode: dropout is identity)."""
    y = x @ w.T + b
    return jnp.where(y > 0, y, negative_slope * y)


if __name__ == "__main__":
    # Small shapes consistent with EncoderBlock(in_dim, out_dim, do_rates):
    B, IN_DIM, OUT_DIM = 16, 32, 64
    DO_RATE = 0.1

    key = jax.random.PRNGKey(0)
    kx, kw, kb = jax.random.split(key, 3)

    x = jax.random.normal(kx, (B, IN_DIM), dtype=jnp.float32)
    bound = 1.0 / jnp.sqrt(IN_DIM)
    w = jax.random.uniform(kw, (OUT_DIM, IN_DIM), jnp.float32, -bound, bound)
    b = jax.random.uniform(kb, (OUT_DIM,), jnp.float32, -bound, bound)

    ref = encoder_block_ref(x, w, b)

    # Eval mode, f32 matmul operands: strict check against the reference.
    out_f32 = encoder_block(x, w, b, negative_slope=0.2, drop_rate=DO_RATE,
                            training=False, matmul_dtype=jnp.float32)
    out_f32 = jax.block_until_ready(out_f32)
    assert out_f32.shape == (B, OUT_DIM)
    assert jnp.allclose(out_f32, ref, atol=1e-5, rtol=1e-5), "f32 mismatch"

    # Eval mode, perf-default bf16 matmul operands: loose tolerance.
    out_bf16 = encoder_block(x, w, b, negative_slope=0.2, drop_rate=DO_RATE,
                             training=False)
    out_bf16 = jax.block_until_ready(out_bf16)
    assert jnp.allclose(out_bf16, ref, atol=2e-2, rtol=2e-2), "bf16 mismatch"

    # Training mode: in-kernel stochastic dropout (hash-based PRNG).
    out_train = encoder_block(x, w, b, negative_slope=0.2, drop_rate=DO_RATE,
                              training=True, seed=123)
    out_train = jax.block_until_ready(out_train)
    assert out_train.shape == (B, OUT_DIM)
    assert bool(jnp.all(jnp.isfinite(out_train)))
    zero_frac = float(jnp.mean(out_train == 0.0))
    assert 0.01 < zero_frac < 0.30, f"dropout fraction off: {zero_frac}"

    print("KERNEL_OK")
</pallas_src>

<mosaic_0001>
module attributes {stable_mosaic.version = 11 : i64} {
  func.func @_encoder_block_kernel(%arg0: i32, %arg1: i32, %arg2: memref<1xi32, #tpu.memory_space<smem>>, %arg3: memref<16x32xf32, #tpu.memory_space<vmem>>, %arg4: memref<32x128xf32, #tpu.memory_space<vmem>>, %arg5: memref<1x128xf32, #tpu.memory_space<vmem>>, %arg6: memref<16x128xf32, #tpu.memory_space<vmem>>) attributes {dimension_semantics = [#tpu.dimension_semantics<parallel>, #tpu.dimension_semantics<parallel>], iteration_bounds = array<i64: 1, 1>, scalar_prefetch = 1 : i64, scratch_operands = 0 : i64, tpu.core_type = #tpu.core_type<tc>, window_params = [{transform_indices = @transform_0, window_bounds = array<i64: 16, 32>}, {transform_indices = @transform_1, window_bounds = array<i64: 32, 128>}, {transform_indices = @transform_2, window_bounds = array<i64: 1, 128>}, {transform_indices = @transform_3, window_bounds = array<i64: 16, 128>}]} {
    %c0 = arith.constant 0 : index
    %c0_0 = arith.constant 0 : index
    %0 = vector.load %arg3[%c0, %c0_0] : memref<16x32xf32, #tpu.memory_space<vmem>>, vector<16x32xf32>
    %c0_1 = arith.constant 0 : index
    %c0_2 = arith.constant 0 : index
    %1 = vector.load %arg4[%c0_1, %c0_2] : memref<32x128xf32, #tpu.memory_space<vmem>>, vector<32x128xf32>
    %cst = arith.constant dense<0.000000e+00> : vector<16x128xf32>
    %2 = tpu.matmul %0, %1, %cst {dimension_numbers = #tpu.dot_dimension_numbers<[1], [0], [0], [1], [0, 0, 1, 1], [], []>} : vector<16x32xf32>, vector<32x128xf32>, vector<16x128xf32> -> vector<16x128xf32>
    %c0_3 = arith.constant 0 : index
    %c0_4 = arith.constant 0 : index
    %3 = vector.load %arg5[%c0_3, %c0_4] : memref<1x128xf32, #tpu.memory_space<vmem>>, vector<1x128xf32>
    %4 = vector.broadcast %3 : vector<1x128xf32> to vector<16x128xf32>
    %5 = arith.addf %2, %4 : vector<16x128xf32>
    %cst_5 = arith.constant 0.000000e+00 : f32
    %6 = vector.broadcast %cst_5 : f32 to vector<16x128xf32>
    %7 = arith.cmpf ogt, %5, %6 : vector<16x128xf32>
    %cst_6 = arith.constant 2.000000e-01 : f32
    %8 = vector.broadcast %cst_6 : f32 to vector<16x128xf32>
    %9 = arith.mulf %8, %5 : vector<16x128xf32>
    %10 = arith.select %7, %5, %9 : vector<16x128xi1>, vector<16x128xf32>
    %c0_7 = arith.constant 0 : index
    %c0_8 = arith.constant 0 : index
    %11 = vector.load %arg6[%c0_7, %c0_8] : memref<16x128xf32, #tpu.memory_space<vmem>>, vector<16x128xf32>
    tpu.vector_store %arg6[%c0_7, %c0_8], %10 {strides = array<i32>} : memref<16x128xf32, #tpu.memory_space<vmem>>, vector<16x128xf32>,
    return
  }
  func.func @transform_0(%arg0: i32, %arg1: i32, %arg2: memref<1xi32, #tpu.memory_space<smem>>) -> (i32, i32) {
    %c0_i32 = arith.constant 0 : i32
    %c0_i32_0 = arith.constant 0 : i32
    return %arg1, %c0_i32 : i32, i32
  }
  func.func @transform_1(%arg0: i32, %arg1: i32, %arg2: memref<1xi32, #tpu.memory_space<smem>>) -> (i32, i32) {
    %c0_i32 = arith.constant 0 : i32
    %c0_i32_0 = arith.constant 0 : i32
    return %c0_i32, %arg0 : i32, i32
  }
  func.func @transform_2(%arg0: i32, %arg1: i32, %arg2: memref<1xi32, #tpu.memory_space<smem>>) -> (i32, i32) {
    %c0_i32 = arith.constant 0 : i32
    %c0_i32_0 = arith.constant 0 : i32
    return %c0_i32, %arg0 : i32, i32
  }
  func.func @transform_3(%arg0: i32, %arg1: i32, %arg2: memref<1xi32, #tpu.memory_space<smem>>) -> (i32, i32) {
    %c0_i32 = arith.constant 0 : i32
    return %arg1, %arg0 : i32, i32
  }
}

</mosaic_0001>

<llo_original>
// kernel: tpu_custom_call.1
$region0: #{tpu_custom_call.1}
  #allocation0 [shape = 'u32[]', space=smem, size = 0x4, offset = 0x4, fixed_abs, tag = 'smem constant byte address 0x4 - core index']
  #allocation1 [shape = 'u32[72,128]{1,0:T(1,128)}', space=vmem, size = 0x9000, scoped, tag = 'internal scratch']
  #allocation2 [shape = 's32[1]{0}', space=sflag, size = 0x4, scoped, tag = 'scoped memory for tpu_custom_call.1']
  #allocation3 [shape = 's32[1]{0:T(128)S(6)}', space=smem, size = 0x200, scoped, tag = 'prefetched SMEM operand 0']
  %s0 = inlined_call_operand.<no memory space> [shape: s32[1], index: 0, kind: input, shape index: {}]
  %s1 = inlined_call_operand.hbm [shape: f32[16,32], index: 1, kind: input, shape index: {}]
  %s2 = inlined_call_operand.hbm [shape: f32[32,128], index: 2, kind: input, shape index: {}]
  %s3 = inlined_call_operand.vmem [shape: f32[1,128], index: 3, kind: input, shape index: {}]
  %s4 = inlined_call_operand.hbm [shape: f32[16,128], index: 4, kind: output, shape index: {}]
  %s5 = sld [smem:[#allocation0]]
  $region30: #{tpu_custom_call.1} parent=0
    _
  %s7 = ssub.s32 1, %s5
  %s8 = scalar_select 0, %s7, %s5
  %9 = sst [smem:[#allocation3]] %s0
  $region1: #{tpu_custom_call.1} parent=0
    #allocation4 [shape = 'u8[8192]{0}', space=vmem, size = 0x2000, scoped, tag = 'input window, operand 1, single buffered']
    #allocation5 [shape = 's32[1]{0}', space=sflag, size = 0x4, scoped, tag = 'scoped memory for tpu_custom_call.1']
    #allocation6 [shape = 's32[1]{0}', space=sflag, size = 0x4, scoped, tag = 'scoped memory for tpu_custom_call.1']
    #allocation7 [shape = 'u8[16384]{0}', space=vmem, size = 0x4000, scoped, tag = 'input window, operand 2, single buffered']
    #allocation8 [shape = 's32[1]{0}', space=sflag, size = 0x4, scoped, tag = 'scoped memory for tpu_custom_call.1']
    #allocation9 [shape = 'u8[8192]{0}', space=vmem, size = 0x2000, scoped, tag = 'output window, operand 0, single buffered']
    %10 = vsyncpa [#allocation5], 0
    %11 = vsyncpa [#allocation8], 0
    %12 = vsyncpa [#allocation6], 0
    // Predicated region
    $region2: #{tpu_custom_call.1} parent=1 // pred_check
      _
    $region3: #{tpu_custom_call.1} parent=1 // pred_check_branch
      %14 = sbr.rel (0) target = $region5
    $region4: #{tpu_custom_call.1} parent=1 // pred_region
      %16 = vsyncadd [#allocation5], 0
      %s17 = sshll.u32 %s1, 4
      %s18 = int_to_ptr.hbm [resolvable:$true] %s17
      %s19 = sshll.u32 [#allocation4], 4
      %s20 = int_to_ptr.vmem [resolvable:$true] %s19
      %25 = dma.hbm_to_vmem [thread:$0]  %s18, 256, %s20, [#allocation5], 128, 128, 8
    $region5: #{tpu_custom_call.1} parent=1 // pred_fallthru
      _
    // Predicated region
    $region6: #{tpu_custom_call.1} parent=1 // pred_check
      _
    $region7: #{tpu_custom_call.1} parent=1 // pred_check_branch
      %27 = sbr.rel (0) target = $region9
    $region8: #{tpu_custom_call.1} parent=1 // pred_region
      %29 = vsyncadd [#allocation8], 0
      %s30 = sshll.u32 %s2, 4
      %s31 = int_to_ptr.hbm [resolvable:$true] %s30
      %s32 = sshll.u32 [#allocation7], 4
      %s33 = int_to_ptr.vmem [resolvable:$true] %s32
      %38 = dma.hbm_to_vmem [thread:$0]  %s31, 512, %s33, [#allocation8], 128, 128, 8
    $region9: #{tpu_custom_call.1} parent=1 // pred_fallthru
      _
    // Predicated region
    $region10: #{tpu_custom_call.1} parent=1 // pred_check
      _
    $region11: #{tpu_custom_call.1} parent=1 // pred_check_branch
      %40 = sbr.rel (0) target = $region13
    $region12: #{tpu_custom_call.1} parent=1 // pred_region
      _
    $region13: #{tpu_custom_call.1} parent=1 // pred_fallthru
      _
    // Predicated region
    $region14: #{tpu_custom_call.1} parent=1 // pred_check
      _
    $region15: #{tpu_custom_call.1} parent=1 // pred_check_branch
      %42 = sbr.rel (0) target = $region17
    $region16: #{tpu_custom_call.1} parent=1 // pred_region
      %44 = dma.done [#allocation5], 256
    $region17: #{tpu_custom_call.1} parent=1 // pred_fallthru
      _
    // Predicated region
    $region18: #{tpu_custom_call.1} parent=1 // pred_check
      _
    $region19: #{tpu_custom_call.1} parent=1 // pred_check_branch
      %46 = sbr.rel (0) target = $region21
    $region20: #{tpu_custom_call.1} parent=1 // pred_region
      %48 = dma.done [#allocation8], 512
    $region21: #{tpu_custom_call.1} parent=1 // pred_fallthru
      _
    %v49 = vld [vmem:[#allocation4] sm:$0xff]
    %v50 = vld [vmem:[#allocation4 + $0x8] sm:$0xff]
    %v51 = vld [vmem:[#allocation7] sm:$0xff]
    %v52 = vld [vmem:[#allocation7 + $0x8] sm:$0xff]
    %v53 = vld [vmem:[#allocation7 + $0x10] sm:$0xff]
    %v54 = vld [vmem:[#allocation7 + $0x18] sm:$0xff]
    %v55 = vld [vmem:[%s3] sm:$0x1]
    %v57 = vperm.slane %v55, 0
    %vm59 = vcmask 261120
    %v61 = vsel %vm59, %v49, 0
    %v64 = vsel %vm59, %v50, 0
    %66 = vmatpush.msra.mxu0 0.0
    %67 = vmatpush.msra.mxu0 0.0
    %68 = vmatpush.msra.mxu0 0.0
    %69 = vmatpush.msra.mxu0 0.0
    %70 = vmatpush.msra.mxu0 0.0
    %71 = vmatpush.msra.mxu0 0.0
    %72 = vmatpush.msra.mxu0 0.0
    %73 = vmatpush.msra.mxu0 0.0
    %74 = vmatpush.msra.mxu0 0.0
    %75 = vmatpush.msra.mxu0 0.0
    %76 = vmatpush.msra.mxu0 0.0
    %77 = vmatpush.msra.mxu0 0.0
    %78 = vmatpush.msra.mxu0 %v54
    %79 = vmatpush.msra.mxu0 %v53
    %80 = vmatpush.msra.mxu0 %v52
    %81 = vmatpush.msra.mxu0 %v51
    %82 = vmatmul.f32.gmra.mxu0 %v61
    %v83 = vpop.f32.mrf.mxu0
    %v84 = vadd.f32 %v57, %v83
    %85 = vmatmul.f32.gmra.mxu0 %v64
    %v86 = vpop.f32.mrf.mxu0
    %v87 = vadd.f32 %v57, %v86
    %88 = vdwg.mxu0
    %vm89 = vcmp.gt.f32.partialorder %v84, 0.0
    %vm90 = vcmp.gt.f32.partialorder %v87, 0.0
    %v91 = vmul.f32 %v84, 0.2
    %v92 = vmul.f32 %v87, 0.2
    %v93 = vsel %vm89, %v84, %v91
    %v94 = vsel %vm90, %v87, %v92
    %95 = vst [vmem:[#allocation9] sm:$0xff] %v93
    %96 = vst [vmem:[#allocation9 + $0x8] sm:$0xff] %v94
    // Predicated region
    $region22: #{tpu_custom_call.1} parent=1 // pred_check
      _
    $region23: #{tpu_custom_call.1} parent=1 // pred_check_branch
      %98 = sbr.rel (0) target = $region25
    $region24: #{tpu_custom_call.1} parent=1 // pred_region
      %100 = vsyncadd [#allocation6], 0
      %s101 = sshll.u32 [#allocation9], 4
      %s102 = int_to_ptr.vmem [resolvable:$true] %s101
      %s103 = sshll.u32 %s4, 4
      %s104 = int_to_ptr.hbm [resolvable:$true] %s103
      %109 = dma.vmem_to_hbm [thread:$0]  %s102, 256, %s104, [#allocation6], 128, 128, 8
    $region25: #{tpu_custom_call.1} parent=1 // pred_fallthru
      _
    // Predicated region
    $region26: #{tpu_custom_call.1} parent=1 // pred_check
      _
    $region27: #{tpu_custom_call.1} parent=1 // pred_check_branch
      %111 = sbr.rel (0) target = $region29
    $region28: #{tpu_custom_call.1} parent=1 // pred_region
      %113 = dma.done [#allocation6], 256
    $region29: #{tpu_custom_call.1} parent=1 // pred_fallthru
      _
    %114 = vsyncpa [#allocation5], 1
    %115 = vsyncpa [#allocation8], 1
    %116 = vsyncpa [#allocation6], 1

</llo_original>
